<compile_context>
chip_gen: v6e
topology: v6e:2x2x1
jax: 0.10.0
libtpu: 0.0.40
codegen_flags: <defaults>
</compile_context>

<pallas_src>
import jax
import jax.numpy as jnp
from jax.experimental import pallas as pl
from jax.experimental.pallas import tpu as pltpu


_LANES = 128
_LANE_CANDIDATES = (2048, 1024, 512, 256, 128)   # widest lane-dense slab first
_TARGET_BLOCK_BYTES = 2 * 1024 * 1024            # ~2 MiB / operand / block (portable v5e..v7x)
_SPLIT_BYTES = 1 * 1024 * 1024                   # >= 2 grid blocks above this (v7x megacore)
_MAX_ROW_BYTES = 4 * 1024 * 1024                 # cap for the original-shape ragged path


def _sublane_multiple(*dtypes):
    """Native sublane packing: f32 -> 8, bf16/f16 -> 16, int8/fp8 -> 32."""
    min_itemsize = min(jnp.dtype(d).itemsize for d in dtypes)
    return max(8, 32 // max(1, min_itemsize))


def _round_up(a, b):
    return -(-a // b) * b


# ------------------------------ Pallas kernel ------------------------------

def _scale_kernel(parm_ref, x_ref, o_ref):
    """parm_ref: (1,) f32 in SMEM; x_ref / o_ref: (rows_blk, lanes) in VMEM."""
    o_ref[...] = (x_ref[...].astype(jnp.float32) * parm_ref[0]).astype(o_ref.dtype)


def _scale_2d(x2d, parm_s, out_dtype, sub):
    """One pallas_call over a 2-D slab; tiles rows, lane dim kept whole."""
    rows, lanes = x2d.shape
    itemsize = max(jnp.dtype(x2d.dtype).itemsize, jnp.dtype(out_dtype).itemsize)

    # Rows per block: ~_TARGET_BLOCK_BYTES of the wider operand, a multiple of
    # the dtype's sublane packing; split into >= 2 blocks for non-trivial sizes
    # so dimension_semantics=("parallel",) can use both TensorCores on v7x.
    target_rows = max(sub, (_TARGET_BLOCK_BYTES // (lanes * itemsize)) // sub * sub)
    if rows * lanes * itemsize > _SPLIT_BYTES:
        target_rows = min(target_rows, _round_up((rows + 1) // 2, sub))

    if target_rows >= rows:
        rows_blk = rows            # single block == full dim (no divisibility needed)
    else:
        rows_blk = target_rows     # multiple of `sub`; ragged last block is masked

    grid = pl.cdiv(rows, rows_blk)

    return pl.pallas_call(
        _scale_kernel,
        out_shape=jax.ShapeDtypeStruct((rows, lanes), out_dtype),
        grid=(grid,),
        in_specs=[
            pl.BlockSpec(memory_space=pltpu.MemorySpace.SMEM),    # scalar parm
            pl.BlockSpec((rows_blk, lanes), lambda i: (i, 0)),    # x row-tile
        ],
        out_specs=pl.BlockSpec((rows_blk, lanes), lambda i: (i, 0)),
        compiler_params=pltpu.CompilerParams(
            dimension_semantics=("parallel",)),
    )(parm_s, x2d)


# --------------------------------- wrapper ---------------------------------

@jax.jit
def weight_forward_pallas(x, parm):
    """Pallas implementation of `weight.forward`: parm * x (parm has shape (1,))."""
    orig_shape = x.shape
    out_dtype = jnp.result_type(x.dtype, jnp.float32)     # PyTorch-style promotion
    parm_s = jnp.asarray(parm, jnp.float32).reshape(1)

    n = x.size
    if n == 0:
        return jnp.zeros(orig_shape, out_dtype)

    sub = _sublane_multiple(x.dtype, out_dtype)
    itemsize = max(jnp.dtype(x.dtype).itemsize, jnp.dtype(out_dtype).itemsize)

    if n % _LANES == 0:
        # Fast path: zero-copy lane-dense view (no pad, no slice). Prefer the
        # widest lane dim that also keeps rows on the sublane multiple.
        lanes = None
        for c in _LANE_CANDIDATES:
            if n % c == 0 and (n // c) % sub == 0:
                lanes = c
                break
        if lanes is None:
            lanes = next(c for c in _LANE_CANDIDATES if n % c == 0)
        out2d = _scale_2d(x.reshape(n // lanes, lanes), parm_s, out_dtype, sub)
        return out2d.reshape(orig_shape)

    if x.ndim >= 2 and orig_shape[-1] * itemsize * sub <= _MAX_ROW_BYTES:
        # Misaligned total but >= 2-D: process in (collapsed) original shape.
        # Lane dim may not be a multiple of 128 (masked stores on the last
        # lane chunk), but we avoid the pad + slice extra HBM passes entirely.
        lanes = orig_shape[-1]
        out2d = _scale_2d(x.reshape(n // lanes, lanes), parm_s, out_dtype, sub)
        return out2d.reshape(orig_shape)

    # Rare fallback (misaligned 1-D / scalar / huge ragged last dim): pad the
    # flat tensor to the next lane multiple and slice the result back.
    rows = pl.cdiv(n, _LANES)
    flat = jnp.pad(x.reshape(-1), (0, rows * _LANES - n))
    out2d = _scale_2d(flat.reshape(rows, _LANES), parm_s, out_dtype, sub)
    return out2d.reshape(-1)[:n].reshape(orig_shape)


# ----------------------------------- main -----------------------------------

if __name__ == "__main__":
    key = jax.random.PRNGKey(0)
    k1, k2, k3 = jax.random.split(key, 3)

    # PyTorch init: self.parm = Parameter(FloatTensor([0.5]))
    parm = jnp.array([0.5], dtype=jnp.float32)

    # Test 1: small NCHW-style input, 128-aligned total -> zero-copy fast path.
    x = jax.random.normal(k1, (2, 4, 16, 16), jnp.float32)
    out = jax.block_until_ready(weight_forward_pallas(x, parm))
    ref = parm[0] * x
    assert out.shape == x.shape and out.dtype == ref.dtype, (out.shape, out.dtype)
    assert float(jnp.max(jnp.abs(out - ref))) < 1e-6, "mismatch vs reference (test 1)"

    # Test 2: odd-sized input -> misaligned original-shape path (no pad/slice).
    y = jax.random.normal(k2, (3, 7, 5), jnp.float32)
    out2 = jax.block_until_ready(weight_forward_pallas(y, parm))
    ref2 = parm[0] * y
    assert out2.shape == y.shape, out2.shape
    assert float(jnp.max(jnp.abs(out2 - ref2))) < 1e-6, "mismatch vs reference (test 2)"

    # Test 3: medium aligned input -> multi-block grid (2 blocks, ragged tail block).
    z = jax.random.normal(k3, (4, 4, 250, 128), jnp.float32)
    out3 = jax.block_until_ready(weight_forward_pallas(z, parm))
    ref3 = parm[0] * z
    assert out3.shape == z.shape, out3.shape
    assert float(jnp.max(jnp.abs(out3 - ref3))) < 1e-6, "mismatch vs reference (test 3)"

    print("KERNEL_OK")
</pallas_src>

<mosaic_0001>
module attributes {stable_mosaic.version = 11 : i64} {
  func.func @_scale_kernel(%arg0: i32, %arg1: memref<1xf32, #tpu.memory_space<smem>>, %arg2: memref<8x256xf32, #tpu.memory_space<vmem>>, %arg3: memref<8x256xf32, #tpu.memory_space<vmem>>) attributes {dimension_semantics = [#tpu.dimension_semantics<parallel>], iteration_bounds = array<i64: 1>, scalar_prefetch = 0 : i64, scratch_operands = 0 : i64, tpu.core_type = #tpu.core_type<tc>, window_params = [{transform_indices = @transform_0, window_bounds = array<i64: 1>}, {transform_indices = @transform_1, window_bounds = array<i64: 8, 256>}, {transform_indices = @transform_2, window_bounds = array<i64: 8, 256>}]} {
    %c0 = arith.constant 0 : index
    %c0_0 = arith.constant 0 : index
    %0 = vector.load %arg2[%c0, %c0_0] : memref<8x256xf32, #tpu.memory_space<vmem>>, vector<8x256xf32>
    %c0_1 = arith.constant 0 : index
    %1 = memref.load %arg1[%c0_1] : memref<1xf32, #tpu.memory_space<smem>>
    %2 = vector.broadcast %1 : f32 to vector<8x256xf32>
    %3 = arith.mulf %0, %2 : vector<8x256xf32>
    %c0_2 = arith.constant 0 : index
    %c0_3 = arith.constant 0 : index
    %4 = vector.load %arg3[%c0_2, %c0_3] : memref<8x256xf32, #tpu.memory_space<vmem>>, vector<8x256xf32>
    tpu.vector_store %arg3[%c0_2, %c0_3], %3 {strides = array<i32>} : memref<8x256xf32, #tpu.memory_space<vmem>>, vector<8x256xf32>,
    return
  }
  func.func @transform_0(%arg0: i32) -> i32 {
    %c0_i32 = arith.constant 0 : i32
    %c0_i32_0 = arith.constant 0 : i32
    return %c0_i32 : i32
  }
  func.func @transform_1(%arg0: i32) -> (i32, i32) {
    %c0_i32 = arith.constant 0 : i32
    %c0_i32_0 = arith.constant 0 : i32
    return %arg0, %c0_i32 : i32, i32
  }
  func.func @transform_2(%arg0: i32) -> (i32, i32) {
    %c0_i32 = arith.constant 0 : i32
    %c0_i32_0 = arith.constant 0 : i32
    return %arg0, %c0_i32 : i32, i32
  }
}

</mosaic_0001>

<llo_original>
// kernel: weight_forward_pallas.1
$region0: #{weight_forward_pallas.1}
  #allocation0 [shape = 'u32[]', space=smem, size = 0x4, offset = 0x4, fixed_abs, tag = 'smem constant byte address 0x4 - core index']
  #allocation1 [shape = 'u32[144,128]{1,0:T(1,128)}', space=vmem, size = 0x12000, scoped, tag = 'internal scratch']
  #allocation2 [shape = 'f32[1]{0:T(128)S(6)}', space=smem, size = 0x200, scoped, tag = 'scoped memory for weight_forward_pallas.1']
  %s0 = inlined_call_operand.<no memory space> [shape: f32[1], index: 0, kind: input, shape index: {}]
  %s1 = inlined_call_operand.vmem [shape: f32[8,256], index: 1, kind: input, shape index: {}]
  %s2 = inlined_call_operand.vmem [shape: f32[8,256], index: 2, kind: output, shape index: {}]
  %s3 = sld [smem:[#allocation0]]
  $region18: #{weight_forward_pallas.1} parent=0
    _
  %s5 = ssub.s32 1, %s3
  %s6 = scalar_select 0, %s5, %s3
  %7 = sst [smem:[#allocation2]] %s0
  // Predicated region
  $region2: #{weight_forward_pallas.1} parent=0 // pred_check
    _
  $region3: #{weight_forward_pallas.1} parent=0 // pred_check_branch
    %9 = sbr.rel (0) target = $region5
  $region4: #{weight_forward_pallas.1} parent=0 // pred_region
    _
  $region5: #{weight_forward_pallas.1} parent=0 // pred_fallthru
    _
  // Predicated region
  $region6: #{weight_forward_pallas.1} parent=0 // pred_check
    _
  $region7: #{weight_forward_pallas.1} parent=0 // pred_check_branch
    %11 = sbr.rel (0) target = $region9
  $region8: #{weight_forward_pallas.1} parent=0 // pred_region
    _
  $region9: #{weight_forward_pallas.1} parent=0 // pred_fallthru
    _
  %v12 = vld [vmem:[%s1] sm:$0xff]
  %v13 = vld [vmem:[%s1 + $0x8] sm:$0xff]
  %s14 = sld [smem:[#allocation2]]
  %v15 = vstv %s14
  %v16 = vmul.f32 %v12, %v15
  %v17 = vmul.f32 %v13, %v15
  %18 = vst [vmem:[%s2] sm:$0xff] %v16
  %19 = vst [vmem:[%s2 + $0x8] sm:$0xff] %v17
  // Predicated region
  $region10: #{weight_forward_pallas.1} parent=0 // pred_check
    _
  $region11: #{weight_forward_pallas.1} parent=0 // pred_check_branch
    %21 = sbr.rel (0) target = $region13
  $region12: #{weight_forward_pallas.1} parent=0 // pred_region
    _
  $region13: #{weight_forward_pallas.1} parent=0 // pred_fallthru
    _
  // Predicated region
  $region14: #{weight_forward_pallas.1} parent=0 // pred_check
    _
  $region15: #{weight_forward_pallas.1} parent=0 // pred_check_branch
    %23 = sbr.rel (0) target = $region17
  $region16: #{weight_forward_pallas.1} parent=0 // pred_region
    _
  $region17: #{weight_forward_pallas.1} parent=0 // pred_fallthru
    _

</llo_original>
